<compile_context>
chip_gen: v6e
topology: v6e:2x2x1
jax: 0.10.0
libtpu: 0.0.40
codegen_flags: <defaults>
</compile_context>

<pallas_src>
import math
from functools import partial

import jax
import jax.numpy as jnp
from jax.experimental import pallas as pl
from jax.experimental.pallas import tpu as pltpu


def _round_up(n, m):
    return ((n + m - 1) // m) * m


# ---------------------------------------------------------------------------
# Pallas kernel: fused MLP (fc1 -> tanh -> fc2 -> tanh -> fused heads)
# ---------------------------------------------------------------------------
def _mlp_kernel(xc_ref, s_ref, w1x_ref, w1s_ref, b1_ref, w2_ref, b2_ref,
                wh_ref, bh_ref, out_ref):
    # fc1 over the two input slabs (split-K against pre-split w1) + tanh.
    h1 = jnp.tanh(
        jnp.dot(xc_ref[...], w1x_ref[...], preferred_element_type=jnp.float32)
        + jnp.dot(s_ref[...], w1s_ref[...], preferred_element_type=jnp.float32)
        + b1_ref[...]
    )
    # fc2 + tanh.
    # TODO(synk): on v5e, if the EUP slot binds after the writeback fix, swap
    # these tanh for a VPU polynomial (hidden=32 wastes 3/4 of the vreg lanes).
    h2 = jnp.tanh(
        jnp.dot(h1, w2_ref[...], preferred_element_type=jnp.float32) + b2_ref[...]
    )
    # Fused value|action head -> (TB, head_pad) output (head_pad = 8).
    out_ref[...] = (
        jnp.dot(h2, wh_ref[...], preferred_element_type=jnp.float32) + bh_ref[...]
    ).astype(out_ref.dtype)


def _choose_batch_tiling(B, *, tb_max=512, m_gran=256):
    """Balanced batch tiles.

    - tb_max bounds per-step VMEM; TB in {256, 512} is the sweet spot
      (sweepable), multiple of 256 for v6e/v7x MXU M-granularity.
    - >=2 tiles whenever the batch allows it so the "parallel" grid axis is
      sharded across both v7x TensorCores.
    - Padding stays below one tile's worth of rows.
    """
    Bp = _round_up(max(B, 1), 8)
    ntiles = pl.cdiv(Bp, tb_max)
    if ntiles < 2 and Bp >= 2 * m_gran:
        ntiles = 2                      # engage v7x megacore when big enough
    if ntiles == 1:
        return Bp, Bp                   # single tile: no extra alignment pad
    TB = _round_up(pl.cdiv(Bp, ntiles), m_gran)
    Bp = _round_up(Bp, TB)
    return TB, Bp


def mlp_forward(x_cnn, s, p, *, tb_max=512):
    """MLP forward.

    x_cnn: (B, n_out) f32 CNN features; s: (B, s_shape) f32 state.
    p: prepared params (see prepare_mlp_params).
    Returns (v, ac_mean) with shapes (B, 1) and (B, action_shape).
    """
    B, n_out = x_cnn.shape
    _, s_dim = s.shape
    hidden = p["w2"].shape[0]
    head_pad = p["wh"].shape[1]
    head_w = 1 + p["wa"].shape[1]       # static: 1 (value) + action_shape

    TB, Bp = _choose_batch_tiling(B, tb_max=tb_max)
    if Bp != B:
        pad = ((0, Bp - B), (0, 0))
        x_cnn = jnp.pad(x_cnn, pad)
        s = jnp.pad(s, pad)

    resident = lambda i: (0, 0)         # weights/biases: same block every step

    out = pl.pallas_call(
        _mlp_kernel,
        out_shape=jax.ShapeDtypeStruct((Bp, head_pad), jnp.float32),
        grid=(Bp // TB,),
        in_specs=[
            pl.BlockSpec((TB, n_out), lambda i: (i, 0)),   # CNN features (tiled)
            pl.BlockSpec((TB, s_dim), lambda i: (i, 0)),   # state (tiled)
            pl.BlockSpec((n_out, hidden), resident),       # w1[:n_out]
            pl.BlockSpec((s_dim, hidden), resident),       # w1[n_out:]
            pl.BlockSpec((1, hidden), resident),           # b1
            pl.BlockSpec((hidden, hidden), resident),      # w2
            pl.BlockSpec((1, hidden), resident),           # b2
            pl.BlockSpec((hidden, head_pad), resident),    # fused head weight
            pl.BlockSpec((1, head_pad), resident),         # fused head bias
        ],
        out_specs=pl.BlockSpec((TB, head_pad), lambda i: (i, 0)),
        compiler_params=pltpu.CompilerParams(
            # batch axis is embarrassingly parallel -> shard across 2 TCs on v7x
            dimension_semantics=("parallel",),
            # tiles are tiny (TB<=512, widths<=32); 32 MiB is safe on all chips
            vmem_limit_bytes=32 * 1024 * 1024,
        ),
    )(x_cnn, s, p["w1x"], p["w1s"], p["b1"], p["w2"], p["b2"], p["wh"], p["bh"])

    out = out[:B]
    return out[:, :1], out[:, 1:head_w]


# ---------------------------------------------------------------------------
# Parameter preparation (done ONCE, not per forward)
# ---------------------------------------------------------------------------
def prepare_mlp_params(raw, *, n_out):
    """Hoisted kernel-side weight prep: head fusion + pad, w1 split.

    Keeps the raw (unfused) weights alongside for the pure-JAX reference and
    for static shape queries (action_shape) under jit.
    """
    action_shape = raw["wa"].shape[1]
    head_w = 1 + action_shape
    head_pad = _round_up(head_w, 8)     # full-array last dim (masked vst, tiny)
    wh = jnp.pad(jnp.concatenate([raw["wv"], raw["wa"]], axis=1),
                 ((0, 0), (0, head_pad - head_w)))
    bh = jnp.pad(jnp.concatenate([raw["bv"], raw["ba"]], axis=1),
                 ((0, 0), (0, head_pad - head_w)))
    prepared = dict(raw)
    prepared.update(
        w1x=raw["w1"][:n_out],          # CNN-feature rows of w1
        w1s=raw["w1"][n_out:],          # state rows of w1
        wh=wh, bh=bh,
    )
    return prepared


# ---------------------------------------------------------------------------
# PixelEmbedding + CombinePolicy wrappers (XLA around the Pallas MLP)
# ---------------------------------------------------------------------------
_FEATURE_MAPS = (64, 32, 16)   # CombinePolicy defaults
_KERNEL_SIZES = (5, 5, 5)
_STRIDES = (2, 2, 2)


def _conv_relu(x, w, b, stride):
    y = jax.lax.conv_general_dilated(
        x, w, window_strides=(stride, stride), padding="VALID",
        dimension_numbers=("NCHW", "OIHW", "NCHW"))
    return jax.nn.relu(y + b[None, :, None, None])


def pixel_embedding(params, x):
    # TODO(synk): the strided Conv2d stack stays in XLA (lax.conv); only the MLP
    # trunk + heads run in the Pallas kernel.
    for i, s in enumerate(_STRIDES):
        x = _conv_relu(x, params[f"conv{i}_w"], params[f"conv{i}_b"], s)
    return x.reshape(x.shape[0], -1)


def combine_policy_forward(params, s, st, o, ot, *, log_std_value):
    """CombinePolicy.forward: (s, st, o, ot) -> (v, ac_mean, ac_std).

    `st` is a dummy state target, stored but never used (matches the module).
    """
    del st
    o_cat = jnp.concatenate([o, ot], axis=1)        # channel concat
    x_cnn = pixel_embedding(params, o_cat)          # CNN embedding
    # CNN features and state go to the kernel as separate inputs (no x||s
    # concat materialization in HBM).
    v, ac_mean = mlp_forward(x_cnn, s, params["mlp"])
    ac_std = jnp.full_like(ac_mean, log_std_value)  # CombinePolicy.std()
    return v, ac_mean, ac_std


# ---------------------------------------------------------------------------
# Parameter init (mimics nn.Linear / nn.Conv2d default: uniform +/- 1/sqrt(fan_in))
# ---------------------------------------------------------------------------
def _linear_init(key, fan_in, fan_out):
    kw, kb = jax.random.split(key)
    bound = 1.0 / math.sqrt(fan_in)
    w = jax.random.uniform(kw, (fan_in, fan_out), jnp.float32, -bound, bound)
    b = jax.random.uniform(kb, (1, fan_out), jnp.float32, -bound, bound)
    return w, b


def _conv_init(key, in_ch, out_ch, k):
    kw, kb = jax.random.split(key)
    bound = 1.0 / math.sqrt(in_ch * k * k)
    w = jax.random.uniform(kw, (out_ch, in_ch, k, k), jnp.float32, -bound, bound)
    b = jax.random.uniform(kb, (out_ch,), jnp.float32, -bound, bound)
    return w, b


def init_params(key, o_shape, ot_shape, s_shape, a_shape, hidden):
    in_ch = o_shape[0] + ot_shape[0]
    h, w = o_shape[1], o_shape[2]
    keys = jax.random.split(key, len(_FEATURE_MAPS) + 4)

    params = {}
    ch = in_ch
    for i, (fm, k, st) in enumerate(zip(_FEATURE_MAPS, _KERNEL_SIZES, _STRIDES)):
        params[f"conv{i}_w"], params[f"conv{i}_b"] = _conv_init(keys[i], ch, fm, k)
        ch = fm
        h = (h - k) // st + 1
        w = (w - k) // st + 1
    n_out = ch * h * w                      # PixelEmbedding.n_out
    input_size = n_out + s_shape            # cnn features + state

    k1, k2, k3, k4 = keys[len(_FEATURE_MAPS):]
    w1, b1 = _linear_init(k1, input_size, hidden)
    w2, b2 = _linear_init(k2, hidden, hidden)
    wv, bv = _linear_init(k3, hidden, 1)
    wa, ba = _linear_init(k4, hidden, a_shape)
    raw = dict(w1=w1, b1=b1, w2=w2, b2=b2, wv=wv, bv=bv, wa=wa, ba=ba)
    params["mlp"] = prepare_mlp_params(raw, n_out=n_out)
    return params


# ---------------------------------------------------------------------------
# Pure-JAX references
# ---------------------------------------------------------------------------
def mlp_reference(x_cnn, s, p):
    x = jnp.concatenate([x_cnn, s], axis=1)
    h1 = jnp.tanh(x @ p["w1"] + p["b1"])
    h2 = jnp.tanh(h1 @ p["w2"] + p["b2"])
    return h2 @ p["wv"] + p["bv"], h2 @ p["wa"] + p["ba"]


def combine_policy_reference(params, s, st, o, ot, *, log_std_value):
    del st
    o_cat = jnp.concatenate([o, ot], axis=1)
    x_cnn = pixel_embedding(params, o_cat)
    v, a = mlp_reference(x_cnn, s, params["mlp"])
    return v, a, jnp.full_like(a, log_std_value)


if __name__ == "__main__":
    # Small shapes consistent with CombinePolicy.
    batch = 4
    o_shape = (3, 30, 30)       # RGB observation
    ot_shape = (3, 30, 30)      # RGB target observation
    s_shape = 6                 # state size
    a_shape = 2                 # action dimension
    hidden = 32                 # args.hidden
    std_start, std_stop, num_frames, n = 0.5, 0.1, 1_000_000, 0
    log_std_value = std_start - (std_start - std_stop) * (n / num_frames)

    key = jax.random.PRNGKey(0)
    kp, ks, kst, ko, kot = jax.random.split(key, 5)
    params = init_params(kp, o_shape, ot_shape, s_shape, a_shape, hidden)
    s = jax.random.normal(ks, (batch, s_shape), jnp.float32)
    st = jax.random.normal(kst, (batch, s_shape), jnp.float32)
    o = jax.random.normal(ko, (batch, *o_shape), jnp.float32)
    ot = jax.random.normal(kot, (batch, *ot_shape), jnp.float32)

    fwd = jax.jit(partial(combine_policy_forward, log_std_value=log_std_value))
    v, ac_mean, ac_std = fwd(params, s, st, o, ot)
    jax.block_until_ready((v, ac_mean, ac_std))

    v_ref, a_ref, std_ref = combine_policy_reference(
        params, s, st, o, ot, log_std_value=log_std_value)

    assert v.shape == (batch, 1) and ac_mean.shape == (batch, a_shape)
    assert ac_std.shape == ac_mean.shape
    assert jnp.allclose(v, v_ref, atol=1e-5, rtol=1e-5)
    assert jnp.allclose(ac_mean, a_ref, atol=1e-5, rtol=1e-5)
    assert jnp.allclose(ac_std, std_ref)

    # Extra check: batch not a multiple of 8 exercises the padding/tiling path
    # with the split (cnn, state) kernel inputs.
    n_out = params["mlp"]["w1x"].shape[0]
    x_odd = jax.random.normal(jax.random.PRNGKey(1), (10, n_out), jnp.float32)
    s_odd = jax.random.normal(jax.random.PRNGKey(2), (10, s_shape), jnp.float32)
    v2, a2 = jax.jit(mlp_forward)(x_odd, s_odd, params["mlp"])
    jax.block_until_ready((v2, a2))
    v2_ref, a2_ref = mlp_reference(x_odd, s_odd, params["mlp"])
    assert jnp.allclose(v2, v2_ref, atol=1e-5, rtol=1e-5)
    assert jnp.allclose(a2, a2_ref, atol=1e-5, rtol=1e-5)

    print("KERNEL_OK")
</pallas_src>

<mosaic_0001>
module attributes {stable_mosaic.version = 11 : i64} {
  func.func @_mlp_kernel(%arg0: i32, %arg1: memref<8x16xf32, #tpu.memory_space<vmem>>, %arg2: memref<8x6xf32, #tpu.memory_space<vmem>>, %arg3: memref<16x32xf32, #tpu.memory_space<vmem>>, %arg4: memref<6x32xf32, #tpu.memory_space<vmem>>, %arg5: memref<1x32xf32, #tpu.memory_space<vmem>>, %arg6: memref<32x32xf32, #tpu.memory_space<vmem>>, %arg7: memref<1x32xf32, #tpu.memory_space<vmem>>, %arg8: memref<32x8xf32, #tpu.memory_space<vmem>>, %arg9: memref<1x8xf32, #tpu.memory_space<vmem>>, %arg10: memref<8x8xf32, #tpu.memory_space<vmem>>) attributes {dimension_semantics = [#tpu.dimension_semantics<parallel>], iteration_bounds = array<i64: 1>, scalar_prefetch = 0 : i64, scratch_operands = 0 : i64, tpu.core_type = #tpu.core_type<tc>, window_params = [{transform_indices = @transform_0, window_bounds = array<i64: 8, 16>}, {transform_indices = @transform_1, window_bounds = array<i64: 8, 6>}, {pipeline_mode = #tpu.pipeline_mode<synchronous>, transform_indices = @transform_2, window_bounds = array<i64: 16, 32>}, {pipeline_mode = #tpu.pipeline_mode<synchronous>, transform_indices = @transform_3, window_bounds = array<i64: 6, 32>}, {pipeline_mode = #tpu.pipeline_mode<synchronous>, transform_indices = @transform_4, window_bounds = array<i64: 1, 32>}, {pipeline_mode = #tpu.pipeline_mode<synchronous>, transform_indices = @transform_5, window_bounds = array<i64: 32, 32>}, {pipeline_mode = #tpu.pipeline_mode<synchronous>, transform_indices = @transform_6, window_bounds = array<i64: 1, 32>}, {pipeline_mode = #tpu.pipeline_mode<synchronous>, transform_indices = @transform_7, window_bounds = array<i64: 32, 8>}, {pipeline_mode = #tpu.pipeline_mode<synchronous>, transform_indices = @transform_8, window_bounds = array<i64: 1, 8>}, {transform_indices = @transform_9, window_bounds = array<i64: 8, 8>}]} {
    %c0 = arith.constant 0 : index
    %c0_0 = arith.constant 0 : index
    %0 = vector.load %arg1[%c0, %c0_0] : memref<8x16xf32, #tpu.memory_space<vmem>>, vector<8x16xf32>
    %c0_1 = arith.constant 0 : index
    %c0_2 = arith.constant 0 : index
    %1 = vector.load %arg3[%c0_1, %c0_2] : memref<16x32xf32, #tpu.memory_space<vmem>>, vector<16x32xf32>
    %cst = arith.constant dense<0.000000e+00> : vector<8x32xf32>
    %2 = tpu.matmul %0, %1, %cst {dimension_numbers = #tpu.dot_dimension_numbers<[1], [0], [0], [1], [0, 0, 1, 1], [], []>} : vector<8x16xf32>, vector<16x32xf32>, vector<8x32xf32> -> vector<8x32xf32>
    %c0_3 = arith.constant 0 : index
    %c0_4 = arith.constant 0 : index
    %3 = vector.load %arg2[%c0_3, %c0_4] : memref<8x6xf32, #tpu.memory_space<vmem>>, vector<8x6xf32>
    %c0_5 = arith.constant 0 : index
    %c0_6 = arith.constant 0 : index
    %4 = vector.load %arg4[%c0_5, %c0_6] : memref<6x32xf32, #tpu.memory_space<vmem>>, vector<6x32xf32>
    %cst_7 = arith.constant dense<0.000000e+00> : vector<8x32xf32>
    %5 = tpu.matmul %3, %4, %cst_7 {dimension_numbers = #tpu.dot_dimension_numbers<[1], [0], [0], [1], [0, 0, 1, 1], [], []>} : vector<8x6xf32>, vector<6x32xf32>, vector<8x32xf32> -> vector<8x32xf32>
    %6 = arith.addf %2, %5 : vector<8x32xf32>
    %c0_8 = arith.constant 0 : index
    %c0_9 = arith.constant 0 : index
    %7 = vector.load %arg5[%c0_8, %c0_9] : memref<1x32xf32, #tpu.memory_space<vmem>>, vector<1x32xf32>
    %8 = vector.broadcast %7 : vector<1x32xf32> to vector<8x32xf32>
    %9 = arith.addf %6, %8 : vector<8x32xf32>
    %10 = math.tanh %9 : vector<8x32xf32>
    %c0_10 = arith.constant 0 : index
    %c0_11 = arith.constant 0 : index
    %11 = vector.load %arg6[%c0_10, %c0_11] : memref<32x32xf32, #tpu.memory_space<vmem>>, vector<32x32xf32>
    %cst_12 = arith.constant dense<0.000000e+00> : vector<8x32xf32>
    %12 = tpu.matmul %10, %11, %cst_12 {dimension_numbers = #tpu.dot_dimension_numbers<[1], [0], [0], [1], [0, 0, 1, 1], [], []>} : vector<8x32xf32>, vector<32x32xf32>, vector<8x32xf32> -> vector<8x32xf32>
    %c0_13 = arith.constant 0 : index
    %c0_14 = arith.constant 0 : index
    %13 = vector.load %arg7[%c0_13, %c0_14] : memref<1x32xf32, #tpu.memory_space<vmem>>, vector<1x32xf32>
    %14 = vector.broadcast %13 : vector<1x32xf32> to vector<8x32xf32>
    %15 = arith.addf %12, %14 : vector<8x32xf32>
    %16 = math.tanh %15 : vector<8x32xf32>
    %c0_15 = arith.constant 0 : index
    %c0_16 = arith.constant 0 : index
    %17 = vector.load %arg8[%c0_15, %c0_16] : memref<32x8xf32, #tpu.memory_space<vmem>>, vector<32x8xf32>
    %cst_17 = arith.constant dense<0.000000e+00> : vector<8x8xf32>
    %18 = tpu.matmul %16, %17, %cst_17 {dimension_numbers = #tpu.dot_dimension_numbers<[1], [0], [0], [1], [0, 0, 1, 1], [], []>} : vector<8x32xf32>, vector<32x8xf32>, vector<8x8xf32> -> vector<8x8xf32>
    %c0_18 = arith.constant 0 : index
    %c0_19 = arith.constant 0 : index
    %19 = vector.load %arg9[%c0_18, %c0_19] : memref<1x8xf32, #tpu.memory_space<vmem>>, vector<1x8xf32>
    %20 = vector.broadcast %19 : vector<1x8xf32> to vector<8x8xf32>
    %21 = arith.addf %18, %20 : vector<8x8xf32>
    %c0_20 = arith.constant 0 : index
    %c0_21 = arith.constant 0 : index
    %22 = vector.load %arg10[%c0_20, %c0_21] : memref<8x8xf32, #tpu.memory_space<vmem>>, vector<8x8xf32>
    tpu.vector_store %arg10[%c0_20, %c0_21], %21 {strides = array<i32>} : memref<8x8xf32, #tpu.memory_space<vmem>>, vector<8x8xf32>,
    return
  }
  func.func @transform_0(%arg0: i32) -> (i32, i32) {
    %c0_i32 = arith.constant 0 : i32
    %c0_i32_0 = arith.constant 0 : i32
    return %arg0, %c0_i32 : i32, i32
  }
  func.func @transform_1(%arg0: i32) -> (i32, i32) {
    %c0_i32 = arith.constant 0 : i32
    %c0_i32_0 = arith.constant 0 : i32
    return %arg0, %c0_i32 : i32, i32
  }
  func.func @transform_2(%arg0: i32) -> (i32, i32) {
    %c0_i32 = arith.constant 0 : i32
    %c0_i32_0 = arith.constant 0 : i32
    %c0_i32_1 = arith.constant 0 : i32
    return %c0_i32, %c0_i32_0 : i32, i32
  }
  func.func @transform_3(%arg0: i32) -> (i32, i32) {
    %c0_i32 = arith.constant 0 : i32
    %c0_i32_0 = arith.constant 0 : i32
    %c0_i32_1 = arith.constant 0 : i32
    return %c0_i32, %c0_i32_0 : i32, i32
  }
  func.func @transform_4(%arg0: i32) -> (i32, i32) {
    %c0_i32 = arith.constant 0 : i32
    %c0_i32_0 = arith.constant 0 : i32
    %c0_i32_1 = arith.constant 0 : i32
    return %c0_i32, %c0_i32_0 : i32, i32
  }
  func.func @transform_5(%arg0: i32) -> (i32, i32) {
    %c0_i32 = arith.constant 0 : i32
    %c0_i32_0 = arith.constant 0 : i32
    %c0_i32_1 = arith.constant 0 : i32
    return %c0_i32, %c0_i32_0 : i32, i32
  }
  func.func @transform_6(%arg0: i32) -> (i32, i32) {
    %c0_i32 = arith.constant 0 : i32
    %c0_i32_0 = arith.constant 0 : i32
    %c0_i32_1 = arith.constant 0 : i32
    return %c0_i32, %c0_i32_0 : i32, i32
  }
  func.func @transform_7(%arg0: i32) -> (i32, i32) {
    %c0_i32 = arith.constant 0 : i32
    %c0_i32_0 = arith.constant 0 : i32
    %c0_i32_1 = arith.constant 0 : i32
    return %c0_i32, %c0_i32_0 : i32, i32
  }
  func.func @transform_8(%arg0: i32) -> (i32, i32) {
    %c0_i32 = arith.constant 0 : i32
    %c0_i32_0 = arith.constant 0 : i32
    %c0_i32_1 = arith.constant 0 : i32
    return %c0_i32, %c0_i32_0 : i32, i32
  }
  func.func @transform_9(%arg0: i32) -> (i32, i32) {
    %c0_i32 = arith.constant 0 : i32
    %c0_i32_0 = arith.constant 0 : i32
    return %arg0, %c0_i32 : i32, i32
  }
}

</mosaic_0001>

<llo_original>
// kernel: combine_policy_forward.1
$region0: #{combine_policy_forward.1}
  #allocation0 [shape = 'u32[]', space=smem, size = 0x4, offset = 0x4, fixed_abs, tag = 'smem constant byte address 0x4 - core index']
  #allocation1 [shape = 'u32[144,128]{1,0:T(1,128)}', space=vmem, size = 0x12000, scoped, tag = 'internal scratch']
  %s0 = inlined_call_operand.vmem [shape: f32[8,16], index: 0, kind: input, shape index: {}]
  %s1 = inlined_call_operand.vmem [shape: f32[8,6], index: 1, kind: input, shape index: {}]
  %s2 = inlined_call_operand.vmem [shape: f32[16,32], index: 2, kind: input, shape index: {}]
  %s3 = inlined_call_operand.vmem [shape: f32[6,32], index: 3, kind: input, shape index: {}]
  %s4 = inlined_call_operand.vmem [shape: f32[1,32], index: 4, kind: input, shape index: {}]
  %s5 = inlined_call_operand.vmem [shape: f32[32,32], index: 5, kind: input, shape index: {}]
  %s6 = inlined_call_operand.vmem [shape: f32[1,32], index: 6, kind: input, shape index: {}]
  %s7 = inlined_call_operand.vmem [shape: f32[32,8], index: 7, kind: input, shape index: {}]
  %s8 = inlined_call_operand.vmem [shape: f32[1,8], index: 8, kind: input, shape index: {}]
  %s9 = inlined_call_operand.vmem [shape: f32[8,8], index: 9, kind: output, shape index: {}]
  %s10 = sld [smem:[#allocation0]]
  $region46: #{combine_policy_forward.1} parent=0
    _
  %s12 = ssub.s32 1, %s10
  %s13 = scalar_select 0, %s12, %s10
  // Predicated region
  $region2: #{combine_policy_forward.1} parent=0 // pred_check
    _
  $region3: #{combine_policy_forward.1} parent=0 // pred_check_branch
    %15 = sbr.rel (0) target = $region5
  $region4: #{combine_policy_forward.1} parent=0 // pred_region
    _
  $region5: #{combine_policy_forward.1} parent=0 // pred_fallthru
    _
  // Predicated region
  $region6: #{combine_policy_forward.1} parent=0 // pred_check
    _
  $region7: #{combine_policy_forward.1} parent=0 // pred_check_branch
    %17 = sbr.rel (0) target = $region9
  $region8: #{combine_policy_forward.1} parent=0 // pred_region
    _
  $region9: #{combine_policy_forward.1} parent=0 // pred_fallthru
    _
  // Predicated region
  $region10: #{combine_policy_forward.1} parent=0 // pred_check
    _
  $region11: #{combine_policy_forward.1} parent=0 // pred_check_branch
    %19 = sbr.rel (0) target = $region13
  $region12: #{combine_policy_forward.1} parent=0 // pred_region
    _
  $region13: #{combine_policy_forward.1} parent=0 // pred_fallthru
    _
  // Predicated region
  $region14: #{combine_policy_forward.1} parent=0 // pred_check
    _
  $region15: #{combine_policy_forward.1} parent=0 // pred_check_branch
    %21 = sbr.rel (0) target = $region17
  $region16: #{combine_policy_forward.1} parent=0 // pred_region
    _
  $region17: #{combine_policy_forward.1} parent=0 // pred_fallthru
    _
  // Predicated region
  $region18: #{combine_policy_forward.1} parent=0 // pred_check
    _
  $region19: #{combine_policy_forward.1} parent=0 // pred_check_branch
    %23 = sbr.rel (0) target = $region21
  $region20: #{combine_policy_forward.1} parent=0 // pred_region
    _
  $region21: #{combine_policy_forward.1} parent=0 // pred_fallthru
    _
  // Predicated region
  $region22: #{combine_policy_forward.1} parent=0 // pred_check
    _
  $region23: #{combine_policy_forward.1} parent=0 // pred_check_branch
    %25 = sbr.rel (0) target = $region25
  $region24: #{combine_policy_forward.1} parent=0 // pred_region
    _
  $region25: #{combine_policy_forward.1} parent=0 // pred_fallthru
    _
  // Predicated region
  $region26: #{combine_policy_forward.1} parent=0 // pred_check
    _
  $region27: #{combine_policy_forward.1} parent=0 // pred_check_branch
    %27 = sbr.rel (0) target = $region29
  $region28: #{combine_policy_forward.1} parent=0 // pred_region
    _
  $region29: #{combine_policy_forward.1} parent=0 // pred_fallthru
    _
  // Predicated region
  $region30: #{combine_policy_forward.1} parent=0 // pred_check
    _
  $region31: #{combine_policy_forward.1} parent=0 // pred_check_branch
    %29 = sbr.rel (0) target = $region33
  $region32: #{combine_policy_forward.1} parent=0 // pred_region
    _
  $region33: #{combine_policy_forward.1} parent=0 // pred_fallthru
    _
  // Predicated region
  $region34: #{combine_policy_forward.1} parent=0 // pred_check
    _
  $region35: #{combine_policy_forward.1} parent=0 // pred_check_branch
    %31 = sbr.rel (0) target = $region37
  $region36: #{combine_policy_forward.1} parent=0 // pred_region
    _
  $region37: #{combine_policy_forward.1} parent=0 // pred_fallthru
    _
  %v32 = vld [vmem:[%s0] sm:$0xff]
  %v33 = vld [vmem:[%s2] sm:$0xff]
  %v34 = vld [vmem:[%s2 + $0x8] sm:$0xff]
  %v35 = vld [vmem:[%s1] sm:$0xff]
  %v36 = vld [vmem:[%s3] sm:$0x3f]
  %vm37 = vcmask 48128
  %v39 = vsel %vm37, %v35, 0
  %vm41 = vcmask 1045504
  %v43 = vsel %vm41, %v36, 0
  %45 = vmatprep.subr.mxu0 0.0
  %46 = vmatpush1.msra.mxu0 0.0
  %47 = vmatprep.subr.mxu0 0.0
  %48 = vmatpush1.msra.mxu0 0.0
  %49 = vmatprep.subr.mxu0 0.0
  %50 = vmatpush1.msra.mxu0 0.0
  %51 = vmatprep.subr.mxu0 0.0
  %52 = vmatpush1.msra.mxu0 0.0
  %53 = vmatprep.subr.mxu0 0.0
  %54 = vmatpush1.msra.mxu0 0.0
  %55 = vmatprep.subr.mxu0 0.0
  %56 = vmatpush1.msra.mxu0 0.0
  %57 = vmatprep.subr.mxu0 0.0
  %58 = vmatpush1.msra.mxu0 0.0
  %59 = vmatprep.subr.mxu0 0.0
  %60 = vmatpush1.msra.mxu0 0.0
  %61 = vmatprep.subr.mxu0 0.0
  %62 = vmatpush1.msra.mxu0 0.0
  %63 = vmatprep.subr.mxu0 0.0
  %64 = vmatpush1.msra.mxu0 0.0
  %65 = vmatprep.subr.mxu0 0.0
  %66 = vmatpush1.msra.mxu0 0.0
  %67 = vmatprep.subr.mxu0 0.0
  %68 = vmatpush1.msra.mxu0 0.0
  %69 = vmatprep.subr.mxu0 0.0
  %70 = vmatpush1.msra.mxu0 0.0
  %71 = vmatprep.subr.mxu0 0.0
  %72 = vmatpush1.msra.mxu0 0.0
  %73 = vmatprep.subr.mxu0 0.0
  %74 = vmatpush1.msra.mxu0 0.0
  %75 = vmatprep.subr.mxu0 0.0
  %76 = vmatpush1.msra.mxu0 %v43
  %77 = vmatprep.subr.mxu0 0.0
  %78 = vmatpush2.msra.mxu0 0.0
  %79 = vmatprep.subr.mxu0 0.0
  %80 = vmatpush2.msra.mxu0 0.0
  %81 = vmatprep.subr.mxu0 0.0
  %82 = vmatpush2.msra.mxu0 0.0
  %83 = vmatprep.subr.mxu0 0.0
  %84 = vmatpush2.msra.mxu0 0.0
  %85 = vmatprep.subr.mxu0 0.0
  %86 = vmatpush2.msra.mxu0 0.0
  %87 = vmatprep.subr.mxu0 0.0
  %88 = vmatpush2.msra.mxu0 0.0
  %89 = vmatprep.subr.mxu0 0.0
  %90 = vmatpush2.msra.mxu0 0.0
  %91 = vmatprep.subr.mxu0 0.0
  %92 = vmatpush2.msra.mxu0 0.0
  %93 = vmatprep.subr.mxu0 0.0
  %94 = vmatpush2.msra.mxu0 0.0
  %95 = vmatprep.subr.mxu0 0.0
  %96 = vmatpush2.msra.mxu0 0.0
  %97 = vmatprep.subr.mxu0 0.0
  %98 = vmatpush2.msra.mxu0 0.0
  %99 = vmatprep.subr.mxu0 0.0
  %100 = vmatpush2.msra.mxu0 0.0
  %101 = vmatprep.subr.mxu0 0.0
  %102 = vmatpush2.msra.mxu0 0.0
  %103 = vmatprep.subr.mxu0 0.0
  %104 = vmatpush2.msra.mxu0 0.0
  %105 = vmatprep.subr.mxu0 0.0
  %106 = vmatpush2.msra.mxu0 0.0
  %107 = vmatprep.subr.mxu0 0.0
  %108 = vmatpush2.msra.mxu0 0.0
  %109 = vmatprep.mubr.f32.mxu0 0.0
  %110 = vmatmul.mubr.f32.gmra.mxu0 %v39
  %v111 = vpop.f32.mrf.mxu0
  %v112 = vadd.f32 0.0, %v111
  %v113 = vpop.f32.mrf.mxu0
  %114 = vdwg.mxu0
  %vm115 = vcmask 130048
  %v117 = vsel %vm115, %v32, 0
  %119 = vmatprep.subr.mxu0 0.0
  %120 = vmatpush1.msra.mxu0 0.0
  %121 = vmatprep.subr.mxu0 0.0
  %122 = vmatpush1.msra.mxu0 0.0
  %123 = vmatprep.subr.mxu0 0.0
  %124 = vmatpush1.msra.mxu0 0.0
  %125 = vmatprep.subr.mxu0 0.0
  %126 = vmatpush1.msra.mxu0 0.0
  %127 = vmatprep.subr.mxu0 0.0
  %128 = vmatpush1.msra.mxu0 0.0
  %129 = vmatprep.subr.mxu0 0.0
  %130 = vmatpush1.msra.mxu0 0.0
  %131 = vmatprep.subr.mxu0 0.0
  %132 = vmatpush1.msra.mxu0 0.0
  %133 = vmatprep.subr.mxu0 0.0
  %134 = vmatpush1.msra.mxu0 0.0
  %135 = vmatprep.subr.mxu0 0.0
  %136 = vmatpush1.msra.mxu0 0.0
  %137 = vmatprep.subr.mxu0 0.0
  %138 = vmatpush1.msra.mxu0 0.0
  %139 = vmatprep.subr.mxu0 0.0
  %140 = vmatpush1.msra.mxu0 0.0
  %141 = vmatprep.subr.mxu0 0.0
  %142 = vmatpush1.msra.mxu0 0.0
  %143 = vmatprep.subr.mxu0 0.0
  %144 = vmatpush1.msra.mxu0 0.0
  %145 = vmatprep.subr.mxu0 0.0
  %146 = vmatpush1.msra.mxu0 0.0
  %147 = vmatprep.subr.mxu0 0.0
  %148 = vmatpush1.msra.mxu0 %v34
  %149 = vmatprep.subr.mxu0 0.0
  %150 = vmatpush1.msra.mxu0 %v33
  %151 = vmatprep.subr.mxu0 0.0
  %152 = vmatpush2.msra.mxu0 0.0
  %153 = vmatprep.subr.mxu0 0.0
  %154 = vmatpush2.msra.mxu0 0.0
  %155 = vmatprep.subr.mxu0 0.0
  %156 = vmatpush2.msra.mxu0 0.0
  %157 = vmatprep.subr.mxu0 0.0
  %158 = vmatpush2.msra.mxu0 0.0
  %159 = vmatprep.subr.mxu0 0.0
  %160 = vmatpush2.msra.mxu0 0.0
  %161 = vmatprep.subr.mxu0 0.0
  %162 = vmatpush2.msra.mxu0 0.0
  %163 = vmatprep.subr.mxu0 0.0
  %164 = vmatpush2.msra.mxu0 0.0
  %165 = vmatprep.subr.mxu0 0.0
  %166 = vmatpush2.msra.mxu0 0.0
  %167 = vmatprep.subr.mxu0 0.0
  %168 = vmatpush2.msra.mxu0 0.0
  %169 = vmatprep.subr.mxu0 0.0
  %170 = vmatpush2.msra.mxu0 0.0
  %171 = vmatprep.subr.mxu0 0.0
  %172 = vmatpush2.msra.mxu0 0.0
  %173 = vmatprep.subr.mxu0 0.0
  %174 = vmatpush2.msra.mxu0 0.0
  %175 = vmatprep.subr.mxu0 0.0
  %176 = vmatpush2.msra.mxu0 0.0
  %177 = vmatprep.subr.mxu0 0.0
  %178 = vmatpush2.msra.mxu0 0.0
  %179 = vmatprep.subr.mxu0 0.0
  %180 = vmatpush2.msra.mxu0 0.0
  %181 = vmatprep.subr.mxu0 0.0
  %182 = vmatpush2.msra.mxu0 0.0
  %183 = vmatprep.mubr.f32.mxu0 0.0
  %184 = vmatmul.mubr.f32.gmra.mxu0 %v117
  %v185 = vpop.f32.mrf.mxu0
  %v186 = vadd.f32 %v112, %v185
  %v187 = vpop.f32.mrf.mxu0
  %188 = vdwg.mxu0
  %v189 = vld [vmem:[%s4] sm:$0x1]
  %v191 = vlaneseq
  %v192 = vshrl.u32 %v191, 7
  %v193 = vsub.s32 0, %v192
  %v194 = vrot.slane %v189, %v193
  %v196 = vadd.f32 %v186, %v194
  %v197 = vtanh.pop %v196
  %v198 = vld [vmem:[%s5] sm:$0xff]
  %v199 = vld [vmem:[%s5 + $0x8] sm:$0xff]
  %v200 = vld [vmem:[%s5 + $0x10] sm:$0xff]
  %v201 = vld [vmem:[%s5 + $0x18] sm:$0xff]
  %v202 = vld [vmem:[%s6] sm:$0x1]
  %v204 = vlaneseq
  %v205 = vshrl.u32 %v204, 7
  %v206 = vsub.s32 0, %v205
  %v207 = vrot.slane %v202, %v206
  %vm209 = vcmask 261120
  %v211 = vsel %vm209, %v197, 0
  %213 = vmatprep.subr.mxu0 0.0
  %214 = vmatpush1.msra.mxu0 0.0
  %215 = vmatprep.subr.mxu0 0.0
  %216 = vmatpush1.msra.mxu0 0.0
  %217 = vmatprep.subr.mxu0 0.0
  %218 = vmatpush1.msra.mxu0 0.0
  %219 = vmatprep.subr.mxu0 0.0
  %220 = vmatpush1.msra.mxu0 0.0
  %221 = vmatprep.subr.mxu0 0.0
  %222 = vmatpush1.msra.mxu0 0.0
  %223 = vmatprep.subr.mxu0 0.0
  %224 = vmatpush1.msra.mxu0 0.0
  %225 = vmatprep.subr.mxu0 0.0
  %226 = vmatpush1.msra.mxu0 0.0
  %227 = vmatprep.subr.mxu0 0.0
  %228 = vmatpush1.msra.mxu0 0.0
  %229 = vmatprep.subr.mxu0 0.0
  %230 = vmatpush1.msra.mxu0 0.0
  %231 = vmatprep.subr.mxu0 0.0
  %232 = vmatpush1.msra.mxu0 0.0
  %233 = vmatprep.subr.mxu0 0.0
  %234 = vmatpush1.msra.mxu0 0.0
  %235 = vmatprep.subr.mxu0 0.0
  %236 = vmatpush1.msra.mxu0 0.0
  %237 = vmatprep.subr.mxu0 0.0
  %238 = vmatpush1.msra.mxu0 %v201
  %239 = vmatprep.subr.mxu0 0.0
  %240 = vmatpush1.msra.mxu0 %v200
  %241 = vmatprep.subr.mxu0 0.0
  %242 = vmatpush1.msra.mxu0 %v199
  %243 = vmatprep.subr.mxu0 0.0
  %244 = vmatpush1.msra.mxu0 %v198
  %245 = vmatprep.subr.mxu0 0.0
  %246 = vmatpush2.msra.mxu0 0.0
  %247 = vmatprep.subr.mxu0 0.0
  %248 = vmatpush2.msra.mxu0 0.0
  %249 = vmatprep.subr.mxu0 0.0
  %250 = vmatpush2.msra.mxu0 0.0
  %251 = vmatprep.subr.mxu0 0.0
  %252 = vmatpush2.msra.mxu0 0.0
  %253 = vmatprep.subr.mxu0 0.0
  %254 = vmatpush2.msra.mxu0 0.0
  %255 = vmatprep.subr.mxu0 0.0
  %256 = vmatpush2.msra.mxu0 0.0
  %257 = vmatprep.subr.mxu0 0.0
  %258 = vmatpush2.msra.mxu0 0.0
  %259 = vmatprep.subr.mxu0 0.0
  %260 = vmatpush2.msra.mxu0 0.0
  %261 = vmatprep.subr.mxu0 0.0
  %262 = vmatpush2.msra.mxu0 0.0
  %263 = vmatprep.subr.mxu0 0.0
  %264 = vmatpush2.msra.mxu0 0.0
  %265 = vmatprep.subr.mxu0 0.0
  %266 = vmatpush2.msra.mxu0 0.0
  %267 = vmatprep.subr.mxu0 0.0
  %268 = vmatpush2.msra.mxu0 0.0
  %269 = vmatprep.subr.mxu0 0.0
  %270 = vmatpush2.msra.mxu0 0.0
  %271 = vmatprep.subr.mxu0 0.0
  %272 = vmatpush2.msra.mxu0 0.0
  %273 = vmatprep.subr.mxu0 0.0
  %274 = vmatpush2.msra.mxu0 0.0
  %275 = vmatprep.subr.mxu0 0.0
  %276 = vmatpush2.msra.mxu0 0.0
  %277 = vmatprep.mubr.f32.mxu0 0.0
  %278 = vmatmul.mubr.f32.gmra.mxu0 %v211
  %v279 = vpop.f32.mrf.mxu0
  %v280 = vadd.f32 %v207, %v279
  %v281 = vpop.f32.mrf.mxu0
  %282 = vdwg.mxu0
  %v283 = vtanh.pop %v280
  %v284 = vld [vmem:[%s7] sm:$0xff]
  %v285 = vld [vmem:[%s7 + $0x8] sm:$0xff]
  %v286 = vld [vmem:[%s7 + $0x10] sm:$0xff]
  %v287 = vld [vmem:[%s7 + $0x18] sm:$0xff]
  %v288 = vld [vmem:[%s8] sm:$0x1]
  %v290 = vlaneseq
  %v291 = vshrl.u32 %v290, 7
  %v292 = vsub.s32 0, %v291
  %v293 = vrot.slane %v288, %v292
  %v296 = vsel %vm209, %v283, 0
  %298 = vmatprep.subr.mxu0 0.0
  %299 = vmatpush1.msra.mxu0 0.0
  %300 = vmatprep.subr.mxu0 0.0
  %301 = vmatpush1.msra.mxu0 0.0
  %302 = vmatprep.subr.mxu0 0.0
  %303 = vmatpush1.msra.mxu0 0.0
  %304 = vmatprep.subr.mxu0 0.0
  %305 = vmatpush1.msra.mxu0 0.0
  %306 = vmatprep.subr.mxu0 0.0
  %307 = vmatpush1.msra.mxu0 0.0
  %308 = vmatprep.subr.mxu0 0.0
  %309 = vmatpush1.msra.mxu0 0.0
  %310 = vmatprep.subr.mxu0 0.0
  %311 = vmatpush1.msra.mxu0 0.0
  %312 = vmatprep.subr.mxu0 0.0
  %313 = vmatpush1.msra.mxu0 0.0
  %314 = vmatprep.subr.mxu0 0.0
  %315 = vmatpush1.msra.mxu0 0.0
  %316 = vmatprep.subr.mxu0 0.0
  %317 = vmatpush1.msra.mxu0 0.0
  %318 = vmatprep.subr.mxu0 0.0
  %319 = vmatpush1.msra.mxu0 0.0
  %320 = vmatprep.subr.mxu0 0.0
  %321 = vmatpush1.msra.mxu0 0.0
  %322 = vmatprep.subr.mxu0 0.0
  %323 = vmatpush1.msra.mxu0 %v287
  %324 = vmatprep.subr.mxu0 0.0
  %325 = vmatpush1.msra.mxu0 %v286
  %326 = vmatprep.subr.mxu0 0.0
  %327 = vmatpush1.msra.mxu0 %v285
  %328 = vmatprep.subr.mxu0 0.0
  %329 = vmatpush1.msra.mxu0 %v284
  %330 = vmatprep.subr.mxu0 0.0
  %331 = vmatpush2.msra.mxu0 0.0
  %332 = vmatprep.subr.mxu0 0.0
  %333 = vmatpush2.msra.mxu0 0.0
  %334 = vmatprep.subr.mxu0 0.0
  %335 = vmatpush2.msra.mxu0 0.0
  %336 = vmatprep.subr.mxu0 0.0
  %337 = vmatpush2.msra.mxu0 0.0
  %338 = vmatprep.subr.mxu0 0.0
  %339 = vmatpush2.msra.mxu0 0.0
  %340 = vmatprep.subr.mxu0 0.0
  %341 = vmatpush2.msra.mxu0 0.0
  %342 = vmatprep.subr.mxu0 0.0
  %343 = vmatpush2.msra.mxu0 0.0
  %344 = vmatprep.subr.mxu0 0.0
  %345 = vmatpush2.msra.mxu0 0.0
  %346 = vmatprep.subr.mxu0 0.0
  %347 = vmatpush2.msra.mxu0 0.0
  %348 = vmatprep.subr.mxu0 0.0
  %349 = vmatpush2.msra.mxu0 0.0
  %350 = vmatprep.subr.mxu0 0.0
  %351 = vmatpush2.msra.mxu0 0.0
  %352 = vmatprep.subr.mxu0 0.0
  %353 = vmatpush2.msra.mxu0 0.0
  %354 = vmatprep.subr.mxu0 0.0
  %355 = vmatpush2.msra.mxu0 0.0
  %356 = vmatprep.subr.mxu0 0.0
  %357 = vmatpush2.msra.mxu0 0.0
  %358 = vmatprep.subr.mxu0 0.0
  %359 = vmatpush2.msra.mxu0 0.0
  %360 = vmatprep.subr.mxu0 0.0
  %361 = vmatpush2.msra.mxu0 0.0
  %362 = vmatprep.mubr.f32.mxu0 0.0
  %363 = vmatmul.mubr.f32.gmra.mxu0 %v296
  %v364 = vpop.f32.mrf.mxu0
  %v365 = vadd.f32 %v293, %v364
  %v366 = vpop.f32.mrf.mxu0
  %367 = vdwg.mxu0
  %vm368 = vcmask 64512
  %369 = vst.msk [vmem:[%s9] sm:$0xff] %vm368, %v365
  // Predicated region
  $region38: #{combine_policy_forward.1} parent=0 // pred_check
    _
  $region39: #{combine_policy_forward.1} parent=0 // pred_check_branch
    %371 = sbr.rel (0) target = $region41
  $region40: #{combine_policy_forward.1} parent=0 // pred_region
    _
  $region41: #{combine_policy_forward.1} parent=0 // pred_fallthru
    _
  // Predicated region
  $region42: #{combine_policy_forward.1} parent=0 // pred_check
    _
  $region43: #{combine_policy_forward.1} parent=0 // pred_check_branch
    %373 = sbr.rel (0) target = $region45
  $region44: #{combine_policy_forward.1} parent=0 // pred_region
    _
  $region45: #{combine_policy_forward.1} parent=0 // pred_fallthru
    _

</llo_original>
